<compile_context>
chip_gen: v7x
topology: tpu7x:2x2x1
jax: 0.10.0
libtpu: 0.0.40
codegen_flags: <defaults>
</compile_context>

<pallas_src>
import jax
import jax.numpy as jnp
from jax.experimental import pallas as pl
from jax.experimental.pallas import tpu as pltpu


# ---------------------------------------------------------------------------
# Tunables
# ---------------------------------------------------------------------------
_PER_BUFFER_BYTE_CAP = 4 * 1024 * 1024     # 4 MiB tiles (perf review)
_VMEM_LIMIT_BYTES = 40 * 1024 * 1024       # explicit scoped-VMEM budget
_MIN_GRID_STEPS = 4                        # let v7x's 2 TCs split the grid
_LANE_CANDIDATES = (8192, 4096, 2048, 1024, 512, 256, 128)


# ---------------------------------------------------------------------------
# Kernel
# ---------------------------------------------------------------------------
def _add_pos_kernel(src_ref, pos_ref, out_ref):
    # src tile: (rep_block, block_rows, lanes); pos tile: (block_rows, lanes).
    # The add broadcasts pos over the repeat axis in-register; explicit cast
    # handles mixed src/pos dtypes (output is the promoted dtype).
    out_ref[...] = (src_ref[...] + pos_ref[...]).astype(out_ref.dtype)


# ---------------------------------------------------------------------------
# Trace-time tiling plan (all Python ints; shapes are static under jit)
# ---------------------------------------------------------------------------
def _broadcast_suffix_elems(src_shape, pos_shape):
    """If pos broadcasts onto src as (1,...,1, *suffix) with suffix == the
    trailing dims of src, return the suffix element count; else None."""
    pad = len(src_shape) - len(pos_shape)
    if pad < 0:
        return None
    pos_aligned = (1,) * pad + tuple(pos_shape)
    suffix_start = len(src_shape)
    for i, p in enumerate(pos_aligned):
        if p != 1:
            suffix_start = i
            break
    suffix_elems = 1
    for i in range(suffix_start, len(src_shape)):
        if pos_aligned[i] != src_shape[i]:
            return None                     # interleaved broadcast -> XLA
        suffix_elems *= src_shape[i]
    return suffix_elems


def _plan_blocks(pos_rows, repeats, lanes, max_itemsize, granule):
    """Return (block_rows, rep_block) or None if no clean tiling exists."""
    row_bytes = lanes * max_itemsize
    cap_rows = max(1, _PER_BUFFER_BYTE_CAP // row_bytes)

    # --- block_rows (splits the pos_rows axis) ---
    want_inner = 1
    if repeats < _MIN_GRID_STEPS:
        want_inner = -(-_MIN_GRID_STEPS // repeats)          # ceil div
    if want_inner > 1:
        target_rows = min(cap_rows, max(granule, pos_rows // want_inner))
    else:
        target_rows = cap_rows

    if pos_rows <= target_rows:
        block_rows = pos_rows               # full extent: always layout-legal
    else:
        block_rows = None
        b = (min(target_rows, pos_rows) // granule) * granule
        while b >= granule:
            if pos_rows % b == 0:
                block_rows = b
                break
            b -= granule
        if block_rows is None:
            # no granule-aligned divisor; full extent only if it fits VMEM
            block_rows = pos_rows if pos_rows <= cap_rows else None
    if block_rows is None:
        return None

    # --- rep_block (splits the broadcast-repeat axis) ---
    rep_cap = max(1, _PER_BUFFER_BYTE_CAP // (block_rows * row_bytes))
    inner_steps = pos_rows // block_rows
    if inner_steps * repeats >= _MIN_GRID_STEPS and inner_steps < _MIN_GRID_STEPS:
        need = -(-_MIN_GRID_STEPS // inner_steps)
        rep_cap = min(rep_cap, max(1, repeats // need))
    rep_block = 1
    for cand in range(min(rep_cap, repeats), 0, -1):
        if repeats % cand == 0:
            rep_block = cand
            break
    return block_rows, rep_block


def _plan_tiling(src, pos, out_dtype):
    """Return (repeats, pos_rows, lanes, block_rows, rep_block) or None."""
    if src.size == 0:
        return None
    suffix_elems = _broadcast_suffix_elems(src.shape, pos.shape)
    if suffix_elems is None:
        return None
    lanes = next((c for c in _LANE_CANDIDATES if suffix_elems % c == 0), None)
    if lanes is None:
        return None                          # not a multiple of 128 elements
    pos_rows = suffix_elems // lanes
    repeats = src.size // suffix_elems
    itemsizes = (src.dtype.itemsize, pos.dtype.itemsize,
                 jnp.dtype(out_dtype).itemsize)
    granule = max(8, 32 // min(itemsizes))   # 8 f32 / 16 bf16 / 32 int8-fp8
    blocks = _plan_blocks(pos_rows, repeats, lanes, max(itemsizes), granule)
    if blocks is None:
        return None
    block_rows, rep_block = blocks
    return repeats, pos_rows, lanes, block_rows, rep_block


# ---------------------------------------------------------------------------
# Fused "with_pos_embed" (single jit: reshapes become bitcasts, one dispatch)
# ---------------------------------------------------------------------------
@jax.jit
def _add_pos_embed(src, pos):
    out_dtype = jnp.result_type(src.dtype, pos.dtype)
    out_bshape = jnp.broadcast_shapes(src.shape, pos.shape)

    plan = _plan_tiling(src, pos, out_dtype) if out_bshape == src.shape else None
    if plan is None:
        # TODO(synk): shapes with interleaved broadcasting or no (8,128)
        # mapping take the fused XLA add (already near the HBM roofline).
        return (src + pos).astype(out_dtype)

    repeats, pos_rows, lanes, block_rows, rep_block = plan
    src_3d = src.reshape(repeats, pos_rows, lanes)
    pos_2d = pos.reshape(pos_rows, lanes)

    inner_steps = pos_rows // block_rows
    rep_steps = repeats // rep_block
    # Grid order (inner j, repeat r): r is fastest, so the pos block index is
    # unchanged while r varies and Pallas skips re-DMAing the shared pos tile.
    grid = (inner_steps, rep_steps)
    src_spec = pl.BlockSpec((rep_block, block_rows, lanes),
                            lambda j, r: (r, j, 0))
    pos_spec = pl.BlockSpec((block_rows, lanes), lambda j, r: (j, 0))

    out_bytes = src.size * jnp.dtype(out_dtype).itemsize
    out_3d = pl.pallas_call(
        _add_pos_kernel,
        out_shape=jax.ShapeDtypeStruct((repeats, pos_rows, lanes), out_dtype),
        grid_spec=pltpu.PrefetchScalarGridSpec(
            num_scalar_prefetch=0,
            grid=grid,
            in_specs=[src_spec, pos_spec],
            out_specs=src_spec,
        ),
        compiler_params=pltpu.CompilerParams(
            # TODO(synk): consider pltpu.CORE_PARALLEL / core_map if the
            # compiler does not shard this grid across v7x's two TensorCores.
            dimension_semantics=("parallel", "parallel"),
            vmem_limit_bytes=_VMEM_LIMIT_BYTES,
        ),
        cost_estimate=pl.CostEstimate(
            flops=src.size,
            transcendentals=0,
            bytes_accessed=src.nbytes + pos.nbytes + out_bytes,
        ),
        # TODO(synk): add input_output_aliases={0: 0} when the caller can
        # donate src (saves an N-byte HBM allocation, peak-memory win).
    )(src_3d, pos_2d)
    return out_3d.reshape(src.shape)


# ---------------------------------------------------------------------------
# Forward (matches TransformerEmptyEncoder.forward)
# ---------------------------------------------------------------------------
def transformer_empty_encoder_forward(
    src, src_mask=None, src_key_padding_mask=None, pos=None
):
    """JAX/Pallas equivalent of TransformerEmptyEncoder.forward.

    src: (S, B, D) array; pos: None or array broadcastable onto src.
    Returns (src_out, sgdt_output_list).  Masks are ignored, as in PyTorch.
    """
    sgdt_output_list = []
    if pos is None:
        # Identity: no kernel, no HBM read/write copy.
        return src, sgdt_output_list
    return _add_pos_embed(src, pos), sgdt_output_list


# ---------------------------------------------------------------------------
# Demo / self-test
# ---------------------------------------------------------------------------
if __name__ == "__main__":
    key = jax.random.PRNGKey(0)
    k1, k2, k3, k4, k5 = jax.random.split(key, 5)

    # DETR encoder convention (S, B, D) with hidden_dim = 256, small shapes.
    S, B, D = 128, 2, 256
    src = jax.random.normal(k1, (S, B, D), dtype=jnp.float32)
    pos = jax.random.normal(k2, (S, B, D), dtype=jnp.float32)

    out, sgdt_list = transformer_empty_encoder_forward(src, pos=pos)
    out = jax.block_until_ready(out)
    assert sgdt_list == []
    assert out.shape == (S, B, D)
    assert jnp.allclose(out, src + pos, atol=1e-6)

    # pos is None: identity, returned without running any kernel.
    out_none, sgdt_list_none = transformer_empty_encoder_forward(src, pos=None)
    jax.block_until_ready(out_none)
    assert sgdt_list_none == []
    assert jnp.array_equal(out_none, src)

    # Broadcast pos (1, B, D): handled via BlockSpec reuse (no broadcast_to).
    pos_b = jax.random.normal(k3, (1, B, D), dtype=jnp.float32)
    out_b, _ = transformer_empty_encoder_forward(src, pos=pos_b)
    out_b = jax.block_until_ready(out_b)
    assert jnp.allclose(out_b, src + pos_b, atol=1e-6)

    # Mixed dtypes (bf16 src + f32 pos): output is the promoted dtype.
    src_bf = src.astype(jnp.bfloat16)
    out_m, _ = transformer_empty_encoder_forward(src_bf, pos=pos)
    out_m = jax.block_until_ready(out_m)
    assert out_m.dtype == jnp.result_type(jnp.bfloat16, jnp.float32)
    assert jnp.allclose(out_m, src_bf + pos, atol=1e-2)

    # Larger shape to exercise a multi-step (>=4) pipelined grid.
    S2, B2, D2 = 2048, 2, 256
    src2 = jax.random.normal(k4, (S2, B2, D2), dtype=jnp.float32)
    pos2 = jax.random.normal(k5, (S2, B2, D2), dtype=jnp.float32)
    out2, _ = transformer_empty_encoder_forward(src2, pos=pos2)
    out2 = jax.block_until_ready(out2)
    assert jnp.allclose(out2, src2 + pos2, atol=1e-6)

    print("KERNEL_OK")
</pallas_src>

<mosaic_0001>
module attributes {stable_mosaic.version = 11 : i64} {
  func.func @_add_pos_kernel(%arg0: i32, %arg1: i32, %arg2: memref<1x8x8192xf32, #tpu.memory_space<vmem>>, %arg3: memref<8x8192xf32, #tpu.memory_space<vmem>>, %arg4: memref<1x8x8192xf32, #tpu.memory_space<vmem>>) attributes {dimension_semantics = [#tpu.dimension_semantics<parallel>, #tpu.dimension_semantics<parallel>], iteration_bounds = array<i64: 1, 1>, scalar_prefetch = 0 : i64, scratch_operands = 0 : i64, tpu.core_type = #tpu.core_type<tc>, window_params = [{transform_indices = @transform_0, window_bounds = array<i64: 1, 8, 8192>}, {transform_indices = @transform_1, window_bounds = array<i64: 8, 8192>}, {transform_indices = @transform_2, window_bounds = array<i64: 1, 8, 8192>}]} {
    %c0 = arith.constant 0 : index
    %c0_0 = arith.constant 0 : index
    %c0_1 = arith.constant 0 : index
    %0 = vector.load %arg2[%c0, %c0_0, %c0_1] : memref<1x8x8192xf32, #tpu.memory_space<vmem>>, vector<1x8x8192xf32>
    %c0_2 = arith.constant 0 : index
    %c0_3 = arith.constant 0 : index
    %1 = vector.load %arg3[%c0_2, %c0_3] : memref<8x8192xf32, #tpu.memory_space<vmem>>, vector<8x8192xf32>
    %2 = vector.shape_cast %1 : vector<8x8192xf32> to vector<1x8x8192xf32>
    %3 = arith.addf %0, %2 : vector<1x8x8192xf32>
    %c0_4 = arith.constant 0 : index
    %c0_5 = arith.constant 0 : index
    %c0_6 = arith.constant 0 : index
    %4 = vector.load %arg4[%c0_4, %c0_5, %c0_6] : memref<1x8x8192xf32, #tpu.memory_space<vmem>>, vector<1x8x8192xf32>
    tpu.vector_store %arg4[%c0_4, %c0_5, %c0_6], %3 {strides = array<i32>} : memref<1x8x8192xf32, #tpu.memory_space<vmem>>, vector<1x8x8192xf32>,
    return
  }
  func.func @transform_0(%arg0: i32, %arg1: i32) -> (i32, i32, i32) {
    %c0_i32 = arith.constant 0 : i32
    %c0_i32_0 = arith.constant 0 : i32
    return %arg1, %arg0, %c0_i32 : i32, i32, i32
  }
  func.func @transform_1(%arg0: i32, %arg1: i32) -> (i32, i32) {
    %c0_i32 = arith.constant 0 : i32
    %c0_i32_0 = arith.constant 0 : i32
    return %arg0, %c0_i32 : i32, i32
  }
  func.func @transform_2(%arg0: i32, %arg1: i32) -> (i32, i32, i32) {
    %c0_i32 = arith.constant 0 : i32
    %c0_i32_0 = arith.constant 0 : i32
    return %arg1, %arg0, %c0_i32 : i32, i32, i32
  }
}

</mosaic_0001>

<llo_original>
// kernel: _add_pos_embed.1
$region0: #{_add_pos_embed.1}
  #allocation0 [shape = 'u32[]', space=smem, size = 0x4, offset = 0x4, fixed_abs, tag = 'smem constant byte address 0x4 - core index']
  #allocation1 [shape = 'u32[144,128]{1,0:T(1,128)}', space=vmem, size = 0x12000, scoped, tag = 'internal scratch']
  %s0 = inlined_call_operand.vmem [shape: f32[1,8,8192], index: 0, kind: input, shape index: {}]
  %s1 = inlined_call_operand.vmem [shape: f32[8,8192], index: 1, kind: input, shape index: {}]
  %s2 = inlined_call_operand.vmem [shape: f32[1,8,8192], index: 2, kind: output, shape index: {}]
  %s3 = sld [smem:[#allocation0]]
  $region18: #{_add_pos_embed.1} parent=0
    _
  %s5 = ssub.s32 1, %s3
  %s6 = scalar_select 0, %s5, %s3
  // Predicated region
  $region2: #{_add_pos_embed.1} parent=0 // pred_check
    _
  $region3: #{_add_pos_embed.1} parent=0 // pred_check_branch
    %8 = sbr.rel (0) target = $region5
  $region4: #{_add_pos_embed.1} parent=0 // pred_region
    _
  $region5: #{_add_pos_embed.1} parent=0 // pred_fallthru
    _
  // Predicated region
  $region6: #{_add_pos_embed.1} parent=0 // pred_check
    _
  $region7: #{_add_pos_embed.1} parent=0 // pred_check_branch
    %10 = sbr.rel (0) target = $region9
  $region8: #{_add_pos_embed.1} parent=0 // pred_region
    _
  $region9: #{_add_pos_embed.1} parent=0 // pred_fallthru
    _
  %v11 = vld [vmem:[%s0] sm:$0xff]
  %v12 = vld [vmem:[%s0 + $0x8] sm:$0xff]
  %v13 = vld [vmem:[%s0 + $0x10] sm:$0xff]
  %v14 = vld [vmem:[%s0 + $0x18] sm:$0xff]
  %v15 = vld [vmem:[%s0 + $0x20] sm:$0xff]
  %v16 = vld [vmem:[%s0 + $0x28] sm:$0xff]
  %v17 = vld [vmem:[%s0 + $0x30] sm:$0xff]
  %v18 = vld [vmem:[%s0 + $0x38] sm:$0xff]
  %v19 = vld [vmem:[%s0 + $0x40] sm:$0xff]
  %v20 = vld [vmem:[%s0 + $0x48] sm:$0xff]
  %v21 = vld [vmem:[%s0 + $0x50] sm:$0xff]
  %v22 = vld [vmem:[%s0 + $0x58] sm:$0xff]
  %v23 = vld [vmem:[%s0 + $0x60] sm:$0xff]
  %v24 = vld [vmem:[%s0 + $0x68] sm:$0xff]
  %v25 = vld [vmem:[%s0 + $0x70] sm:$0xff]
  %v26 = vld [vmem:[%s0 + $0x78] sm:$0xff]
  %v27 = vld [vmem:[%s0 + $0x80] sm:$0xff]
  %v28 = vld [vmem:[%s0 + $0x88] sm:$0xff]
  %v29 = vld [vmem:[%s0 + $0x90] sm:$0xff]
  %v30 = vld [vmem:[%s0 + $0x98] sm:$0xff]
  %v31 = vld [vmem:[%s0 + $0xa0] sm:$0xff]
  %v32 = vld [vmem:[%s0 + $0xa8] sm:$0xff]
  %v33 = vld [vmem:[%s0 + $0xb0] sm:$0xff]
  %v34 = vld [vmem:[%s0 + $0xb8] sm:$0xff]
  %v35 = vld [vmem:[%s0 + $0xc0] sm:$0xff]
  %v36 = vld [vmem:[%s0 + $0xc8] sm:$0xff]
  %v37 = vld [vmem:[%s0 + $0xd0] sm:$0xff]
  %v38 = vld [vmem:[%s0 + $0xd8] sm:$0xff]
  %v39 = vld [vmem:[%s0 + $0xe0] sm:$0xff]
  %v40 = vld [vmem:[%s0 + $0xe8] sm:$0xff]
  %v41 = vld [vmem:[%s0 + $0xf0] sm:$0xff]
  %v42 = vld [vmem:[%s0 + $0xf8] sm:$0xff]
  %v43 = vld [vmem:[%s0 + $0x100] sm:$0xff]
  %v44 = vld [vmem:[%s0 + $0x108] sm:$0xff]
  %v45 = vld [vmem:[%s0 + $0x110] sm:$0xff]
  %v46 = vld [vmem:[%s0 + $0x118] sm:$0xff]
  %v47 = vld [vmem:[%s0 + $0x120] sm:$0xff]
  %v48 = vld [vmem:[%s0 + $0x128] sm:$0xff]
  %v49 = vld [vmem:[%s0 + $0x130] sm:$0xff]
  %v50 = vld [vmem:[%s0 + $0x138] sm:$0xff]
  %v51 = vld [vmem:[%s0 + $0x140] sm:$0xff]
  %v52 = vld [vmem:[%s0 + $0x148] sm:$0xff]
  %v53 = vld [vmem:[%s0 + $0x150] sm:$0xff]
  %v54 = vld [vmem:[%s0 + $0x158] sm:$0xff]
  %v55 = vld [vmem:[%s0 + $0x160] sm:$0xff]
  %v56 = vld [vmem:[%s0 + $0x168] sm:$0xff]
  %v57 = vld [vmem:[%s0 + $0x170] sm:$0xff]
  %v58 = vld [vmem:[%s0 + $0x178] sm:$0xff]
  %v59 = vld [vmem:[%s0 + $0x180] sm:$0xff]
  %v60 = vld [vmem:[%s0 + $0x188] sm:$0xff]
  %v61 = vld [vmem:[%s0 + $0x190] sm:$0xff]
  %v62 = vld [vmem:[%s0 + $0x198] sm:$0xff]
  %v63 = vld [vmem:[%s0 + $0x1a0] sm:$0xff]
  %v64 = vld [vmem:[%s0 + $0x1a8] sm:$0xff]
  %v65 = vld [vmem:[%s0 + $0x1b0] sm:$0xff]
  %v66 = vld [vmem:[%s0 + $0x1b8] sm:$0xff]
  %v67 = vld [vmem:[%s0 + $0x1c0] sm:$0xff]
  %v68 = vld [vmem:[%s0 + $0x1c8] sm:$0xff]
  %v69 = vld [vmem:[%s0 + $0x1d0] sm:$0xff]
  %v70 = vld [vmem:[%s0 + $0x1d8] sm:$0xff]
  %v71 = vld [vmem:[%s0 + $0x1e0] sm:$0xff]
  %v72 = vld [vmem:[%s0 + $0x1e8] sm:$0xff]
  %v73 = vld [vmem:[%s0 + $0x1f0] sm:$0xff]
  %v74 = vld [vmem:[%s0 + $0x1f8] sm:$0xff]
  %v75 = vld [vmem:[%s1] sm:$0xff]
  %v76 = vld [vmem:[%s1 + $0x8] sm:$0xff]
  %v77 = vld [vmem:[%s1 + $0x10] sm:$0xff]
  %v78 = vld [vmem:[%s1 + $0x18] sm:$0xff]
  %v79 = vld [vmem:[%s1 + $0x20] sm:$0xff]
  %v80 = vld [vmem:[%s1 + $0x28] sm:$0xff]
  %v81 = vld [vmem:[%s1 + $0x30] sm:$0xff]
  %v82 = vld [vmem:[%s1 + $0x38] sm:$0xff]
  %v83 = vld [vmem:[%s1 + $0x40] sm:$0xff]
  %v84 = vld [vmem:[%s1 + $0x48] sm:$0xff]
  %v85 = vld [vmem:[%s1 + $0x50] sm:$0xff]
  %v86 = vld [vmem:[%s1 + $0x58] sm:$0xff]
  %v87 = vld [vmem:[%s1 + $0x60] sm:$0xff]
  %v88 = vld [vmem:[%s1 + $0x68] sm:$0xff]
  %v89 = vld [vmem:[%s1 + $0x70] sm:$0xff]
  %v90 = vld [vmem:[%s1 + $0x78] sm:$0xff]
  %v91 = vld [vmem:[%s1 + $0x80] sm:$0xff]
  %v92 = vld [vmem:[%s1 + $0x88] sm:$0xff]
  %v93 = vld [vmem:[%s1 + $0x90] sm:$0xff]
  %v94 = vld [vmem:[%s1 + $0x98] sm:$0xff]
  %v95 = vld [vmem:[%s1 + $0xa0] sm:$0xff]
  %v96 = vld [vmem:[%s1 + $0xa8] sm:$0xff]
  %v97 = vld [vmem:[%s1 + $0xb0] sm:$0xff]
  %v98 = vld [vmem:[%s1 + $0xb8] sm:$0xff]
  %v99 = vld [vmem:[%s1 + $0xc0] sm:$0xff]
  %v100 = vld [vmem:[%s1 + $0xc8] sm:$0xff]
  %v101 = vld [vmem:[%s1 + $0xd0] sm:$0xff]
  %v102 = vld [vmem:[%s1 + $0xd8] sm:$0xff]
  %v103 = vld [vmem:[%s1 + $0xe0] sm:$0xff]
  %v104 = vld [vmem:[%s1 + $0xe8] sm:$0xff]
  %v105 = vld [vmem:[%s1 + $0xf0] sm:$0xff]
  %v106 = vld [vmem:[%s1 + $0xf8] sm:$0xff]
  %v107 = vld [vmem:[%s1 + $0x100] sm:$0xff]
  %v108 = vld [vmem:[%s1 + $0x108] sm:$0xff]
  %v109 = vld [vmem:[%s1 + $0x110] sm:$0xff]
  %v110 = vld [vmem:[%s1 + $0x118] sm:$0xff]
  %v111 = vld [vmem:[%s1 + $0x120] sm:$0xff]
  %v112 = vld [vmem:[%s1 + $0x128] sm:$0xff]
  %v113 = vld [vmem:[%s1 + $0x130] sm:$0xff]
  %v114 = vld [vmem:[%s1 + $0x138] sm:$0xff]
  %v115 = vld [vmem:[%s1 + $0x140] sm:$0xff]
  %v116 = vld [vmem:[%s1 + $0x148] sm:$0xff]
  %v117 = vld [vmem:[%s1 + $0x150] sm:$0xff]
  %v118 = vld [vmem:[%s1 + $0x158] sm:$0xff]
  %v119 = vld [vmem:[%s1 + $0x160] sm:$0xff]
  %v120 = vld [vmem:[%s1 + $0x168] sm:$0xff]
  %v121 = vld [vmem:[%s1 + $0x170] sm:$0xff]
  %v122 = vld [vmem:[%s1 + $0x178] sm:$0xff]
  %v123 = vld [vmem:[%s1 + $0x180] sm:$0xff]
  %v124 = vld [vmem:[%s1 + $0x188] sm:$0xff]
  %v125 = vld [vmem:[%s1 + $0x190] sm:$0xff]
  %v126 = vld [vmem:[%s1 + $0x198] sm:$0xff]
  %v127 = vld [vmem:[%s1 + $0x1a0] sm:$0xff]
  %v128 = vld [vmem:[%s1 + $0x1a8] sm:$0xff]
  %v129 = vld [vmem:[%s1 + $0x1b0] sm:$0xff]
  %v130 = vld [vmem:[%s1 + $0x1b8] sm:$0xff]
  %v131 = vld [vmem:[%s1 + $0x1c0] sm:$0xff]
  %v132 = vld [vmem:[%s1 + $0x1c8] sm:$0xff]
  %v133 = vld [vmem:[%s1 + $0x1d0] sm:$0xff]
  %v134 = vld [vmem:[%s1 + $0x1d8] sm:$0xff]
  %v135 = vld [vmem:[%s1 + $0x1e0] sm:$0xff]
  %v136 = vld [vmem:[%s1 + $0x1e8] sm:$0xff]
  %v137 = vld [vmem:[%s1 + $0x1f0] sm:$0xff]
  %v138 = vld [vmem:[%s1 + $0x1f8] sm:$0xff]
  %v139 = vadd.f32 %v11, %v75
  %v140 = vadd.f32 %v12, %v76
  %v141 = vadd.f32 %v13, %v77
  %v142 = vadd.f32 %v14, %v78
  %v143 = vadd.f32 %v15, %v79
  %v144 = vadd.f32 %v16, %v80
  %v145 = vadd.f32 %v17, %v81
  %v146 = vadd.f32 %v18, %v82
  %v147 = vadd.f32 %v19, %v83
  %v148 = vadd.f32 %v20, %v84
  %v149 = vadd.f32 %v21, %v85
  %v150 = vadd.f32 %v22, %v86
  %v151 = vadd.f32 %v23, %v87
  %v152 = vadd.f32 %v24, %v88
  %v153 = vadd.f32 %v25, %v89
  %v154 = vadd.f32 %v26, %v90
  %v155 = vadd.f32 %v27, %v91
  %v156 = vadd.f32 %v28, %v92
  %v157 = vadd.f32 %v29, %v93
  %v158 = vadd.f32 %v30, %v94
  %v159 = vadd.f32 %v31, %v95
  %v160 = vadd.f32 %v32, %v96
  %v161 = vadd.f32 %v33, %v97
  %v162 = vadd.f32 %v34, %v98
  %v163 = vadd.f32 %v35, %v99
  %v164 = vadd.f32 %v36, %v100
  %v165 = vadd.f32 %v37, %v101
  %v166 = vadd.f32 %v38, %v102
  %v167 = vadd.f32 %v39, %v103
  %v168 = vadd.f32 %v40, %v104
  %v169 = vadd.f32 %v41, %v105
  %v170 = vadd.f32 %v42, %v106
  %v171 = vadd.f32 %v43, %v107
  %v172 = vadd.f32 %v44, %v108
  %v173 = vadd.f32 %v45, %v109
  %v174 = vadd.f32 %v46, %v110
  %v175 = vadd.f32 %v47, %v111
  %v176 = vadd.f32 %v48, %v112
  %v177 = vadd.f32 %v49, %v113
  %v178 = vadd.f32 %v50, %v114
  %v179 = vadd.f32 %v51, %v115
  %v180 = vadd.f32 %v52, %v116
  %v181 = vadd.f32 %v53, %v117
  %v182 = vadd.f32 %v54, %v118
  %v183 = vadd.f32 %v55, %v119
  %v184 = vadd.f32 %v56, %v120
  %v185 = vadd.f32 %v57, %v121
  %v186 = vadd.f32 %v58, %v122
  %v187 = vadd.f32 %v59, %v123
  %v188 = vadd.f32 %v60, %v124
  %v189 = vadd.f32 %v61, %v125
  %v190 = vadd.f32 %v62, %v126
  %v191 = vadd.f32 %v63, %v127
  %v192 = vadd.f32 %v64, %v128
  %v193 = vadd.f32 %v65, %v129
  %v194 = vadd.f32 %v66, %v130
  %v195 = vadd.f32 %v67, %v131
  %v196 = vadd.f32 %v68, %v132
  %v197 = vadd.f32 %v69, %v133
  %v198 = vadd.f32 %v70, %v134
  %v199 = vadd.f32 %v71, %v135
  %v200 = vadd.f32 %v72, %v136
  %v201 = vadd.f32 %v73, %v137
  %v202 = vadd.f32 %v74, %v138
  %203 = vst [vmem:[%s2] sm:$0xff] %v139
  %204 = vst [vmem:[%s2 + $0x8] sm:$0xff] %v140
  %205 = vst [vmem:[%s2 + $0x10] sm:$0xff] %v141
  %206 = vst [vmem:[%s2 + $0x18] sm:$0xff] %v142
  %207 = vst [vmem:[%s2 + $0x20] sm:$0xff] %v143
  %208 = vst [vmem:[%s2 + $0x28] sm:$0xff] %v144
  %209 = vst [vmem:[%s2 + $0x30] sm:$0xff] %v145
  %210 = vst [vmem:[%s2 + $0x38] sm:$0xff] %v146
  %211 = vst [vmem:[%s2 + $0x40] sm:$0xff] %v147
  %212 = vst [vmem:[%s2 + $0x48] sm:$0xff] %v148
  %213 = vst [vmem:[%s2 + $0x50] sm:$0xff] %v149
  %214 = vst [vmem:[%s2 + $0x58] sm:$0xff] %v150
  %215 = vst [vmem:[%s2 + $0x60] sm:$0xff] %v151
  %216 = vst [vmem:[%s2 + $0x68] sm:$0xff] %v152
  %217 = vst [vmem:[%s2 + $0x70] sm:$0xff] %v153
  %218 = vst [vmem:[%s2 + $0x78] sm:$0xff] %v154
  %219 = vst [vmem:[%s2 + $0x80] sm:$0xff] %v155
  %220 = vst [vmem:[%s2 + $0x88] sm:$0xff] %v156
  %221 = vst [vmem:[%s2 + $0x90] sm:$0xff] %v157
  %222 = vst [vmem:[%s2 + $0x98] sm:$0xff] %v158
  %223 = vst [vmem:[%s2 + $0xa0] sm:$0xff] %v159
  %224 = vst [vmem:[%s2 + $0xa8] sm:$0xff] %v160
  %225 = vst [vmem:[%s2 + $0xb0] sm:$0xff] %v161
  %226 = vst [vmem:[%s2 + $0xb8] sm:$0xff] %v162
  %227 = vst [vmem:[%s2 + $0xc0] sm:$0xff] %v163
  %228 = vst [vmem:[%s2 + $0xc8] sm:$0xff] %v164
  %229 = vst [vmem:[%s2 + $0xd0] sm:$0xff] %v165
  %230 = vst [vmem:[%s2 + $0xd8] sm:$0xff] %v166
  %231 = vst [vmem:[%s2 + $0xe0] sm:$0xff] %v167
  %232 = vst [vmem:[%s2 + $0xe8] sm:$0xff] %v168
  %233 = vst [vmem:[%s2 + $0xf0] sm:$0xff] %v169
  %234 = vst [vmem:[%s2 + $0xf8] sm:$0xff] %v170
  %235 = vst [vmem:[%s2 + $0x100] sm:$0xff] %v171
  %236 = vst [vmem:[%s2 + $0x108] sm:$0xff] %v172
  %237 = vst [vmem:[%s2 + $0x110] sm:$0xff] %v173
  %238 = vst [vmem:[%s2 + $0x118] sm:$0xff] %v174
  %239 = vst [vmem:[%s2 + $0x120] sm:$0xff] %v175
  %240 = vst [vmem:[%s2 + $0x128] sm:$0xff] %v176
  %241 = vst [vmem:[%s2 + $0x130] sm:$0xff] %v177
  %242 = vst [vmem:[%s2 + $0x138] sm:$0xff] %v178
  %243 = vst [vmem:[%s2 + $0x140] sm:$0xff] %v179
  %244 = vst [vmem:[%s2 + $0x148] sm:$0xff] %v180
  %245 = vst [vmem:[%s2 + $0x150] sm:$0xff] %v181
  %246 = vst [vmem:[%s2 + $0x158] sm:$0xff] %v182
  %247 = vst [vmem:[%s2 + $0x160] sm:$0xff] %v183
  %248 = vst [vmem:[%s2 + $0x168] sm:$0xff] %v184
  %249 = vst [vmem:[%s2 + $0x170] sm:$0xff] %v185
  %250 = vst [vmem:[%s2 + $0x178] sm:$0xff] %v186
  %251 = vst [vmem:[%s2 + $0x180] sm:$0xff] %v187
  %252 = vst [vmem:[%s2 + $0x188] sm:$0xff] %v188
  %253 = vst [vmem:[%s2 + $0x190] sm:$0xff] %v189
  %254 = vst [vmem:[%s2 + $0x198] sm:$0xff] %v190
  %255 = vst [vmem:[%s2 + $0x1a0] sm:$0xff] %v191
  %256 = vst [vmem:[%s2 + $0x1a8] sm:$0xff] %v192
  %257 = vst [vmem:[%s2 + $0x1b0] sm:$0xff] %v193
  %258 = vst [vmem:[%s2 + $0x1b8] sm:$0xff] %v194
  %259 = vst [vmem:[%s2 + $0x1c0] sm:$0xff] %v195
  %260 = vst [vmem:[%s2 + $0x1c8] sm:$0xff] %v196
  %261 = vst [vmem:[%s2 + $0x1d0] sm:$0xff] %v197
  %262 = vst [vmem:[%s2 + $0x1d8] sm:$0xff] %v198
  %263 = vst [vmem:[%s2 + $0x1e0] sm:$0xff] %v199
  %264 = vst [vmem:[%s2 + $0x1e8] sm:$0xff] %v200
  %265 = vst [vmem:[%s2 + $0x1f0] sm:$0xff] %v201
  %266 = vst [vmem:[%s2 + $0x1f8] sm:$0xff] %v202
  // Predicated region
  $region10: #{_add_pos_embed.1} parent=0 // pred_check
    _
  $region11: #{_add_pos_embed.1} parent=0 // pred_check_branch
    %268 = sbr.rel (0) target = $region13
  $region12: #{_add_pos_embed.1} parent=0 // pred_region
    _
  $region13: #{_add_pos_embed.1} parent=0 // pred_fallthru
    _
  // Predicated region
  $region14: #{_add_pos_embed.1} parent=0 // pred_check
    _
  $region15: #{_add_pos_embed.1} parent=0 // pred_check_branch
    %270 = sbr.rel (0) target = $region17
  $region16: #{_add_pos_embed.1} parent=0 // pred_region
    _
  $region17: #{_add_pos_embed.1} parent=0 // pred_fallthru
    _

</llo_original>
